<compile_context>
chip_gen: v7x
topology: tpu7x:2x2x1
jax: 0.10.0
libtpu: 0.0.40
codegen_flags: <defaults>
</compile_context>

<pallas_src>
import jax
import jax.numpy as jnp
from jax.experimental import pallas as pl
from jax.experimental.pallas import tpu as pltpu


def _round_up(a, m):
    return ((a + m - 1) // m) * m


def _cdiv(a, b):
    return (a + b - 1) // b


# Conservative VMEM working-set target for tiling decisions: comfortably under
# v7x's 64 MiB physical per-TC VMEM, tiny vs. v5e/v6e's 128 MiB.
_VMEM_TARGET = 40 << 20


# ---------------------------------------------------------------------------
# Kernels
# ---------------------------------------------------------------------------

def _make_resident_kernel(g_valid, g_pad):
    """W1 fully VMEM-resident: grid = (batch_tiles,), no K reduction."""

    def kernel(x_ref, w1_ref, b1_ref, w2_ref, b2_ref, out_ref):
        # x arrives f32 from HBM; cast to bf16 on the VPU right before the MXU.
        x = x_ref[...].astype(jnp.bfloat16)
        h = jnp.dot(x, w1_ref[...], preferred_element_type=jnp.float32)
        h = jnp.maximum(h + b1_ref[...], 0.0)
        o = jnp.dot(h.astype(jnp.bfloat16), w2_ref[...],
                    preferred_element_type=jnp.float32)
        o = jnp.maximum(o + b2_ref[...], 0.0)
        if g_valid < g_pad:  # mask padded genre columns out of the softmax
            col = jax.lax.broadcasted_iota(jnp.int32, o.shape, 1)
            o = jnp.where(col < g_valid, o, -1e30)
        m = jnp.max(o, axis=-1, keepdims=True)
        shifted = o - m
        lse = jnp.log(jnp.sum(jnp.exp(shifted), axis=-1, keepdims=True))
        out_ref[...] = (shifted - lse).astype(out_ref.dtype)

    return kernel


def _make_ktiled_kernel(g_valid, g_pad):
    """Vocab (K) reduction tiled across the grid; f32 accumulator in VMEM."""

    def kernel(x_ref, w1_ref, b1_ref, w2_ref, b2_ref, out_ref, acc_ref):
        k = pl.program_id(1)
        part = jnp.dot(x_ref[...].astype(jnp.bfloat16), w1_ref[...],
                       preferred_element_type=jnp.float32)

        @pl.when(k == 0)
        def _first():
            acc_ref[...] = part          # no separate zero-init store

        @pl.when(k > 0)
        def _accum():
            acc_ref[...] = acc_ref[...] + part

        @pl.when(k == pl.num_programs(1) - 1)
        def _finalize():
            h = jnp.maximum(acc_ref[...] + b1_ref[...], 0.0)
            o = jnp.dot(h.astype(jnp.bfloat16), w2_ref[...],
                        preferred_element_type=jnp.float32)
            o = jnp.maximum(o + b2_ref[...], 0.0)
            if g_valid < g_pad:
                col = jax.lax.broadcasted_iota(jnp.int32, o.shape, 1)
                o = jnp.where(col < g_valid, o, -1e30)
            m = jnp.max(o, axis=-1, keepdims=True)
            shifted = o - m
            lse = jnp.log(jnp.sum(jnp.exp(shifted), axis=-1, keepdims=True))
            out_ref[...] = (shifted - lse).astype(out_ref.dtype)

    return kernel


# ---------------------------------------------------------------------------
# Module wrapper (pads / casts weights once)
# ---------------------------------------------------------------------------

class Plot2VecPallas:
    """Plot2Vec forward pass, fused Pallas TPU kernel.

    w1_t: (V, E) layer-1 weight pre-transposed to (in, out); b1: (E,)
    w2_t: (E, G) layer-2 weight pre-transposed to (in, out); b2: (G,)
    """

    def __init__(self, w1_t, b1, w2_t, b2, *,
                 batch_tile=512, vocab_tile=2048,
                 resident_w1_budget_bytes=20 << 20):
        V, E = w1_t.shape
        E2, G = w2_t.shape
        assert E2 == E
        self.V, self.E, self.G = V, E, G
        self.E_pad = _round_up(E, 128)
        self.G_pad = _round_up(G, 128)
        self.batch_tile = max(16, batch_tile)

        # ---- residency decision (W1 bf16 slab fully in VMEM?) ------------
        V_pad_res = _round_up(V, 128)
        w1_res_bytes = V_pad_res * self.E_pad * 2        # bf16
        res_fixed = 2 * (w1_res_bytes                    # 2x: pipeline buffers
                         + self.E_pad * self.G_pad * 2
                         + self.E_pad * 4 + self.G_pad * 4)
        res_row = 2 * 4 * (V_pad_res + self.G_pad)       # f32 x + f32 out rows
        self.resident = (2 * w1_res_bytes <= resident_w1_budget_bytes
                         and res_fixed + 16 * res_row <= _VMEM_TARGET)

        if self.resident:
            self.V_pad = V_pad_res
            self.TK = self.V_pad                          # whole vocab per step
            self._fixed_bytes = res_fixed
            self._row_bytes = res_row
        else:
            self.TK = min(vocab_tile, _round_up(V, 128))
            self.V_pad = _round_up(V, self.TK)
            self._fixed_bytes = 2 * (self.TK * self.E_pad * 2
                                     + self.E_pad * self.G_pad * 2
                                     + self.E_pad * 4 + self.G_pad * 4)
            self._row_bytes = (2 * 4 * (self.TK + self.G_pad)
                               + self.E_pad * 4)          # + acc scratch row

        # ---- one-time pad + bf16 cast of weights (hoisted out of forward) -
        f32, bf16 = jnp.float32, jnp.bfloat16
        self.w1 = jnp.pad(jnp.asarray(w1_t, f32).astype(bf16),
                          ((0, self.V_pad - V), (0, self.E_pad - E)))
        self.b1 = jnp.pad(jnp.asarray(b1, f32).reshape(1, E),
                          ((0, 0), (0, self.E_pad - E)))
        self.w2 = jnp.pad(jnp.asarray(w2_t, f32).astype(bf16),
                          ((0, self.E_pad - E), (0, self.G_pad - G)))
        self.b2 = jnp.pad(jnp.asarray(b2, f32).reshape(1, G),
                          ((0, 0), (0, self.G_pad - G)))
        jax.block_until_ready((self.w1, self.b1, self.w2, self.b2))

    # ---- tiling plan ------------------------------------------------------
    def _choose_tb(self, B):
        tb_cap = max(16, ((_VMEM_TARGET - self._fixed_bytes)
                          // self._row_bytes) // 16 * 16)
        tb = min(self.batch_tile, _round_up(B, 16), tb_cap)
        # v7x megacore: keep >= 2 "parallel" batch tiles when batch permits,
        # without dropping below 128 rows per tile.
        if B >= 256 and _cdiv(B, tb) < 2:
            tb = max(128, _round_up(_cdiv(B, 2), 16))
        return tb

    def _vmem_limit(self, tb):
        b = self._fixed_bytes + tb * self._row_bytes + (8 << 20)  # + headroom
        return min(max(b, 16 << 20), 64 << 20)   # safe on v5e/v6e/v7x

    # ---- forward ------------------------------------------------------------
    def __call__(self, x):
        B, V = x.shape
        assert V == self.V
        TB = self._choose_tb(B)
        B_pad = _round_up(B, TB)
        V_pad, E_pad, G_pad, TK = self.V_pad, self.E_pad, self.G_pad, self.TK

        x = jnp.asarray(x, jnp.float32)
        if (B_pad, V_pad) != (B, V):       # pad only if actually unaligned
            x = jnp.pad(x, ((0, B_pad - B), (0, V_pad - V)))

        if self.resident:
            out = pl.pallas_call(
                _make_resident_kernel(self.G, G_pad),
                out_shape=jax.ShapeDtypeStruct((B_pad, G_pad), jnp.float32),
                grid_spec=pltpu.PrefetchScalarGridSpec(
                    num_scalar_prefetch=0,
                    grid=(B_pad // TB,),
                    in_specs=[
                        pl.BlockSpec((TB, V_pad), lambda i: (i, 0)),      # x
                        pl.BlockSpec((V_pad, E_pad), lambda i: (0, 0)),   # w1 resident
                        pl.BlockSpec((1, E_pad), lambda i: (0, 0)),       # b1
                        pl.BlockSpec((E_pad, G_pad), lambda i: (0, 0)),   # w2
                        pl.BlockSpec((1, G_pad), lambda i: (0, 0)),       # b2
                    ],
                    out_specs=pl.BlockSpec((TB, G_pad), lambda i: (i, 0)),
                ),
                compiler_params=pltpu.CompilerParams(
                    dimension_semantics=("parallel",),
                    vmem_limit_bytes=self._vmem_limit(TB),
                ),
            )(x, self.w1, self.b1, self.w2, self.b2)
        else:
            out = pl.pallas_call(
                _make_ktiled_kernel(self.G, G_pad),
                out_shape=jax.ShapeDtypeStruct((B_pad, G_pad), jnp.float32),
                grid_spec=pltpu.PrefetchScalarGridSpec(
                    num_scalar_prefetch=0,
                    grid=(B_pad // TB, V_pad // TK),
                    in_specs=[
                        pl.BlockSpec((TB, TK), lambda i, k: (i, k)),       # x
                        pl.BlockSpec((TK, E_pad), lambda i, k: (k, 0)),    # w1 slab
                        pl.BlockSpec((1, E_pad), lambda i, k: (0, 0)),     # b1
                        pl.BlockSpec((E_pad, G_pad), lambda i, k: (0, 0)), # w2
                        pl.BlockSpec((1, G_pad), lambda i, k: (0, 0)),     # b2
                    ],
                    out_specs=pl.BlockSpec((TB, G_pad), lambda i, k: (i, 0)),
                    scratch_shapes=[pltpu.VMEM((TB, E_pad), jnp.float32)],
                ),
                compiler_params=pltpu.CompilerParams(
                    dimension_semantics=("parallel", "arbitrary"),
                    vmem_limit_bytes=self._vmem_limit(TB),
                ),
            )(x, self.w1, self.b1, self.w2, self.b2)

        return out[:B, :self.G]

    # TODO(synk): the PyTorch module's transform() helper (layer-1 + relu only)
    # is not implemented here; only forward() is fused.


# ---------------------------------------------------------------------------
# Init + pure-JAX reference (same bf16-input / f32-accum numerics)
# ---------------------------------------------------------------------------

def init_params(key, vocab_size, embedding_dim, genres_size):
    """nn.Linear-style init; weights pre-transposed to (in, out)."""
    k1, k2, k3, k4 = jax.random.split(key, 4)
    bound1 = 1.0 / jnp.sqrt(jnp.float32(vocab_size))
    bound2 = 1.0 / jnp.sqrt(jnp.float32(embedding_dim))
    w1_t = jax.random.uniform(k1, (vocab_size, embedding_dim), jnp.float32, -bound1, bound1)
    b1 = jax.random.uniform(k2, (embedding_dim,), jnp.float32, -bound1, bound1)
    w2_t = jax.random.uniform(k3, (embedding_dim, genres_size), jnp.float32, -bound2, bound2)
    b2 = jax.random.uniform(k4, (genres_size,), jnp.float32, -bound2, bound2)
    return w1_t, b1, w2_t, b2


def reference_forward(x, w1_t, b1, w2_t, b2):
    h = jnp.dot(x.astype(jnp.bfloat16), w1_t.astype(jnp.bfloat16),
                preferred_element_type=jnp.float32) + b1.reshape(1, -1)
    h = jnp.maximum(h, 0.0)
    o = jnp.dot(h.astype(jnp.bfloat16), w2_t.astype(jnp.bfloat16),
                preferred_element_type=jnp.float32) + b2.reshape(1, -1)
    o = jnp.maximum(o, 0.0)
    return jax.nn.log_softmax(o, axis=1)


if __name__ == "__main__":
    key = jax.random.PRNGKey(0)

    # Case 1: resident-W1 fast path (W1 fits VMEM; single batch-parallel grid).
    B, V, E, G = 64, 1000, 128, 20
    kx, kp = jax.random.split(key)
    x = jax.random.uniform(kx, (B, V), jnp.float32)
    params = init_params(kp, V, E, G)
    model = Plot2VecPallas(*params)
    assert model.resident
    out = model(x)
    jax.block_until_ready(out)
    ref = reference_forward(x, *params)
    assert out.shape == (B, G)
    assert jnp.allclose(out, ref, atol=5e-3, rtol=5e-3), "case 1 mismatch vs reference"

    # Case 2: K-tiled fallback path (residency disabled), unaligned shapes ->
    # exercises padding, vocab-axis accumulation and genre-column masking.
    B2, V2, E2, G2 = 40, 600, 96, 24
    kx2, kp2 = jax.random.split(jax.random.fold_in(key, 1))
    x2 = jax.random.uniform(kx2, (B2, V2), jnp.float32)
    params2 = init_params(kp2, V2, E2, G2)
    model2 = Plot2VecPallas(*params2, vocab_tile=256, resident_w1_budget_bytes=0)
    assert not model2.resident
    out2 = model2(x2)
    jax.block_until_ready(out2)
    ref2 = reference_forward(x2, *params2)
    assert out2.shape == (B2, G2)
    assert jnp.allclose(out2, ref2, atol=5e-3, rtol=5e-3), "case 2 mismatch vs reference"

    print("KERNEL_OK")
</pallas_src>

<mosaic_0001>
module attributes {stable_mosaic.version = 11 : i64} {
  func.func @kernel(%arg0: i32, %arg1: memref<64x1024xf32, #tpu.memory_space<vmem>>, %arg2: memref<1024x128xbf16, #tpu.memory_space<vmem>>, %arg3: memref<1x128xf32, #tpu.memory_space<vmem>>, %arg4: memref<128x128xbf16, #tpu.memory_space<vmem>>, %arg5: memref<1x128xf32, #tpu.memory_space<vmem>>, %arg6: memref<64x128xf32, #tpu.memory_space<vmem>>) attributes {dimension_semantics = [#tpu.dimension_semantics<parallel>], iteration_bounds = array<i64: 1>, scalar_prefetch = 0 : i64, scratch_operands = 0 : i64, tpu.core_type = #tpu.core_type<tc>, window_params = [{transform_indices = @transform_0, window_bounds = array<i64: 64, 1024>}, {pipeline_mode = #tpu.pipeline_mode<synchronous>, transform_indices = @transform_1, window_bounds = array<i64: 1024, 128>}, {pipeline_mode = #tpu.pipeline_mode<synchronous>, transform_indices = @transform_2, window_bounds = array<i64: 1, 128>}, {pipeline_mode = #tpu.pipeline_mode<synchronous>, transform_indices = @transform_3, window_bounds = array<i64: 128, 128>}, {pipeline_mode = #tpu.pipeline_mode<synchronous>, transform_indices = @transform_4, window_bounds = array<i64: 1, 128>}, {transform_indices = @transform_5, window_bounds = array<i64: 64, 128>}]} {
    %c0 = arith.constant 0 : index
    %c0_0 = arith.constant 0 : index
    %0 = vector.load %arg1[%c0, %c0_0] : memref<64x1024xf32, #tpu.memory_space<vmem>>, vector<64x1024xf32>
    %1 = arith.truncf %0 : vector<64x1024xf32> to vector<64x1024xbf16>
    %c0_1 = arith.constant 0 : index
    %c0_2 = arith.constant 0 : index
    %2 = vector.load %arg2[%c0_1, %c0_2] : memref<1024x128xbf16, #tpu.memory_space<vmem>>, vector<1024x128xbf16>
    %cst = arith.constant dense<0.000000e+00> : vector<64x128xf32>
    %3 = tpu.matmul %1, %2, %cst {dimension_numbers = #tpu.dot_dimension_numbers<[1], [0], [0], [1], [0, 0, 1, 1], [], []>} : vector<64x1024xbf16>, vector<1024x128xbf16>, vector<64x128xf32> -> vector<64x128xf32>
    %c0_3 = arith.constant 0 : index
    %c0_4 = arith.constant 0 : index
    %4 = vector.load %arg3[%c0_3, %c0_4] : memref<1x128xf32, #tpu.memory_space<vmem>>, vector<1x128xf32>
    %5 = vector.broadcast %4 : vector<1x128xf32> to vector<64x128xf32>
    %6 = arith.addf %3, %5 : vector<64x128xf32>
    %cst_5 = arith.constant 0.000000e+00 : f32
    %7 = vector.broadcast %cst_5 : f32 to vector<64x128xf32>
    %8 = arith.maximumf %6, %7 : vector<64x128xf32>
    %9 = arith.truncf %8 : vector<64x128xf32> to vector<64x128xbf16>
    %c0_6 = arith.constant 0 : index
    %c0_7 = arith.constant 0 : index
    %10 = vector.load %arg4[%c0_6, %c0_7] : memref<128x128xbf16, #tpu.memory_space<vmem>>, vector<128x128xbf16>
    %cst_8 = arith.constant dense<0.000000e+00> : vector<64x128xf32>
    %11 = tpu.matmul %9, %10, %cst_8 {dimension_numbers = #tpu.dot_dimension_numbers<[1], [0], [0], [1], [0, 0, 1, 1], [], []>} : vector<64x128xbf16>, vector<128x128xbf16>, vector<64x128xf32> -> vector<64x128xf32>
    %c0_9 = arith.constant 0 : index
    %c0_10 = arith.constant 0 : index
    %12 = vector.load %arg5[%c0_9, %c0_10] : memref<1x128xf32, #tpu.memory_space<vmem>>, vector<1x128xf32>
    %13 = vector.broadcast %12 : vector<1x128xf32> to vector<64x128xf32>
    %14 = arith.addf %11, %13 : vector<64x128xf32>
    %cst_11 = arith.constant 0.000000e+00 : f32
    %15 = vector.broadcast %cst_11 : f32 to vector<64x128xf32>
    %16 = arith.maximumf %14, %15 : vector<64x128xf32>
    %17 = tpu.iota {dimensions = array<i32: 1>} : vector<64x128xi32>
    %c20_i32 = arith.constant 20 : i32
    %18 = vector.broadcast %c20_i32 : i32 to vector<64x128xi32>
    %19 = arith.cmpi slt, %17, %18 : vector<64x128xi32>
    %cst_12 = arith.constant -1.000000e+30 : f32
    %20 = vector.broadcast %cst_12 : f32 to vector<64x128xf32>
    %21 = arith.select %19, %16, %20 : vector<64x128xi1>, vector<64x128xf32>
    %cst_13 = arith.constant dense<0xFF800000> : vector<64xf32>
    %22 = vector.multi_reduction <maximumf>, %21, %cst_13 [1] : vector<64x128xf32> to vector<64xf32>
    %23 = vector.shape_cast %22 : vector<64xf32> to vector<64x1xf32>
    %24 = vector.broadcast %23 : vector<64x1xf32> to vector<64x128xf32>
    %25 = arith.subf %21, %24 : vector<64x128xf32>
    %26 = math.exp %25 : vector<64x128xf32>
    %cst_14 = arith.constant dense<0.000000e+00> : vector<64xf32>
    %27 = vector.multi_reduction <add>, %26, %cst_14 [1] : vector<64x128xf32> to vector<64xf32>
    %28 = vector.shape_cast %27 : vector<64xf32> to vector<64x1xf32>
    %29 = math.log %28 : vector<64x1xf32>
    %30 = vector.broadcast %29 : vector<64x1xf32> to vector<64x128xf32>
    %31 = arith.subf %25, %30 : vector<64x128xf32>
    %c0_15 = arith.constant 0 : index
    %c0_16 = arith.constant 0 : index
    %32 = vector.load %arg6[%c0_15, %c0_16] : memref<64x128xf32, #tpu.memory_space<vmem>>, vector<64x128xf32>
    tpu.vector_store %arg6[%c0_15, %c0_16], %31 {strides = array<i32>} : memref<64x128xf32, #tpu.memory_space<vmem>>, vector<64x128xf32>,
    return
  }
  func.func @transform_0(%arg0: i32) -> (i32, i32) {
    %c0_i32 = arith.constant 0 : i32
    %c0_i32_0 = arith.constant 0 : i32
    return %arg0, %c0_i32 : i32, i32
  }
  func.func @transform_1(%arg0: i32) -> (i32, i32) {
    %c0_i32 = arith.constant 0 : i32
    %c0_i32_0 = arith.constant 0 : i32
    %c0_i32_1 = arith.constant 0 : i32
    return %c0_i32, %c0_i32_0 : i32, i32
  }
  func.func @transform_2(%arg0: i32) -> (i32, i32) {
    %c0_i32 = arith.constant 0 : i32
    %c0_i32_0 = arith.constant 0 : i32
    %c0_i32_1 = arith.constant 0 : i32
    return %c0_i32, %c0_i32_0 : i32, i32
  }
  func.func @transform_3(%arg0: i32) -> (i32, i32) {
    %c0_i32 = arith.constant 0 : i32
    %c0_i32_0 = arith.constant 0 : i32
    %c0_i32_1 = arith.constant 0 : i32
    return %c0_i32, %c0_i32_0 : i32, i32
  }
  func.func @transform_4(%arg0: i32) -> (i32, i32) {
    %c0_i32 = arith.constant 0 : i32
    %c0_i32_0 = arith.constant 0 : i32
    %c0_i32_1 = arith.constant 0 : i32
    return %c0_i32, %c0_i32_0 : i32, i32
  }
  func.func @transform_5(%arg0: i32) -> (i32, i32) {
    %c0_i32 = arith.constant 0 : i32
    %c0_i32_0 = arith.constant 0 : i32
    return %arg0, %c0_i32 : i32, i32
  }
}

</mosaic_0001>

<llo_original>
// kernel: tpu_custom_call.1
$region0: #{tpu_custom_call.1}
  #allocation0 [shape = 'u32[]', space=smem, size = 0x4, offset = 0x4, fixed_abs, tag = 'smem constant byte address 0x4 - core index']
  #allocation1 [shape = 'u32[144,128]{1,0:T(1,128)}', space=vmem, size = 0x12000, scoped, tag = 'internal scratch']
  %s0 = inlined_call_operand.hbm [shape: f32[64,1024], index: 0, kind: input, shape index: {}]
  %s1 = inlined_call_operand.hbm [shape: bf16[1024,128], index: 1, kind: input, shape index: {}]
  %s2 = inlined_call_operand.vmem [shape: f32[1,128], index: 2, kind: input, shape index: {}]
  %s3 = inlined_call_operand.hbm [shape: bf16[128,128], index: 3, kind: input, shape index: {}]
  %s4 = inlined_call_operand.vmem [shape: f32[1,128], index: 4, kind: input, shape index: {}]
  %s5 = inlined_call_operand.hbm [shape: f32[64,128], index: 5, kind: output, shape index: {}]
  %s6 = sld [smem:[#allocation0]]
  $region42: #{tpu_custom_call.1} parent=0
    _
  %s8 = ssub.s32 1, %s6
  %s9 = scalar_select 0, %s8, %s6
  $region1: #{tpu_custom_call.1} parent=0
    #allocation2 [shape = 'u8[262144]{0}', space=vmem, size = 0x40000, scoped, tag = 'input window, operand 0, single buffered']
    #allocation3 [shape = 's32[1]{0}', space=sflag, size = 0x4, scoped, tag = 'scoped memory for tpu_custom_call.1']
    #allocation4 [shape = 's32[1]{0}', space=sflag, size = 0x4, scoped, tag = 'scoped memory for tpu_custom_call.1']
    #allocation5 [shape = 'u8[262144]{0}', space=vmem, size = 0x40000, scoped, tag = 'input window, operand 1, single buffered']
    #allocation6 [shape = 's32[1]{0}', space=sflag, size = 0x4, scoped, tag = 'scoped memory for tpu_custom_call.1']
    #allocation7 [shape = 'u8[32768]{0}', space=vmem, size = 0x8000, scoped, tag = 'input window, operand 3, single buffered']
    #allocation8 [shape = 'u8[32768]{0}', space=vmem, size = 0x8000, scoped, tag = 'output window, operand 0, single buffered']
    %10 = vsyncpa [#allocation3], 0
    %11 = vsyncpa [#allocation6], 0
    %12 = vsyncpa [#allocation4], 0
    // Predicated region
    $region2: #{tpu_custom_call.1} parent=1 // pred_check
      _
    $region3: #{tpu_custom_call.1} parent=1 // pred_check_branch
      %14 = sbr.rel (0) target = $region5
    $region4: #{tpu_custom_call.1} parent=1 // pred_region
      %s16 = ssub.s32 8192, 8192
      %17 = vsyncadd [#allocation3], %s16
      %s18 = sshll.u32 [#allocation2], 4
      %s19 = int_to_ptr.vmem [resolvable:$true] %s18
      %24 = dma.hbm_to_vmem [thread:$0]  %s0, 8192, %s19, [#allocation3], 1024, 1024, 64
    $region5: #{tpu_custom_call.1} parent=1 // pred_fallthru
      _
    // Predicated region
    $region6: #{tpu_custom_call.1} parent=1 // pred_check
      _
    $region7: #{tpu_custom_call.1} parent=1 // pred_check_branch
      %26 = sbr.rel (0) target = $region9
    $region8: #{tpu_custom_call.1} parent=1 // pred_region
      %s28 = ssub.s32 8192, 8192
      %29 = vsyncadd [#allocation6], %s28
      %s30 = sshll.u32 [#allocation5], 4
      %s31 = int_to_ptr.vmem [resolvable:$true] %s30
      %36 = dma.hbm_to_vmem [thread:$0]  %s1, 8192, %s31, [#allocation6], 64, 64, 4
    $region9: #{tpu_custom_call.1} parent=1 // pred_fallthru
      _
    // Predicated region
    $region10: #{tpu_custom_call.1} parent=1 // pred_check
      _
    $region11: #{tpu_custom_call.1} parent=1 // pred_check_branch
      %38 = sbr.rel (0) target = $region13
    $region12: #{tpu_custom_call.1} parent=1 // pred_region
      _
    $region13: #{tpu_custom_call.1} parent=1 // pred_fallthru
      _
    // Predicated region
    $region14: #{tpu_custom_call.1} parent=1 // pred_check
      _
    $region15: #{tpu_custom_call.1} parent=1 // pred_check_branch
      %40 = sbr.rel (0) target = $region17
    $region16: #{tpu_custom_call.1} parent=1 // pred_region
      %s42 = ssub.s32 1024, 1024
      %43 = vsyncadd [#allocation6], %s42
      %s44 = sshll.u32 [#allocation7], 4
      %s45 = int_to_ptr.vmem [resolvable:$true] %s44
      %50 = dma.hbm_to_vmem [thread:$0]  %s3, 1024, %s45, [#allocation6], 64, 64, 4
    $region17: #{tpu_custom_call.1} parent=1 // pred_fallthru
      _
    // Predicated region
    $region18: #{tpu_custom_call.1} parent=1 // pred_check
      _
    $region19: #{tpu_custom_call.1} parent=1 // pred_check_branch
      %52 = sbr.rel (0) target = $region21
    $region20: #{tpu_custom_call.1} parent=1 // pred_region
      _
    $region21: #{tpu_custom_call.1} parent=1 // pred_fallthru
      _
    // Predicated region
    $region22: #{tpu_custom_call.1} parent=1 // pred_check
      _
    $region23: #{tpu_custom_call.1} parent=1 // pred_check_branch
      %54 = sbr.rel (0) target = $region25
    $region24: #{tpu_custom_call.1} parent=1 // pred_region
      %55 = dma.done [#allocation3], 8192
    $region25: #{tpu_custom_call.1} parent=1 // pred_fallthru
      _
    // Predicated region
    $region26: #{tpu_custom_call.1} parent=1 // pred_check
      _
    $region27: #{tpu_custom_call.1} parent=1 // pred_check_branch
      %57 = sbr.rel (0) target = $region29
    $region28: #{tpu_custom_call.1} parent=1 // pred_region
      %58 = dma.done [#allocation6], 8192
    $region29: #{tpu_custom_call.1} parent=1 // pred_fallthru
      _
    // Predicated region
    $region30: #{tpu_custom_call.1} parent=1 // pred_check
      _
    $region31: #{tpu_custom_call.1} parent=1 // pred_check_branch
      %60 = sbr.rel (0) target = $region33
    $region32: #{tpu_custom_call.1} parent=1 // pred_region
      %61 = dma.done [#allocation6], 1024
    $region33: #{tpu_custom_call.1} parent=1 // pred_fallthru
      _
    %v63 = vld [vmem:[#allocation2] sm:$0xff]
    %v64 = vld [vmem:[#allocation2 + $0x8] sm:$0xff]
    %v65 = vld [vmem:[#allocation2 + $0x10] sm:$0xff]
    %v66 = vld [vmem:[#allocation2 + $0x18] sm:$0xff]
    %v67 = vld [vmem:[#allocation2 + $0x20] sm:$0xff]
    %v68 = vld [vmem:[#allocation2 + $0x28] sm:$0xff]
    %v69 = vld [vmem:[#allocation2 + $0x30] sm:$0xff]
    %v70 = vld [vmem:[#allocation2 + $0x38] sm:$0xff]
    %v71 = vld [vmem:[#allocation2 + $0x40] sm:$0xff]
    %v72 = vld [vmem:[#allocation2 + $0x48] sm:$0xff]
    %v73 = vld [vmem:[#allocation2 + $0x50] sm:$0xff]
    %v74 = vld [vmem:[#allocation2 + $0x58] sm:$0xff]
    %v75 = vld [vmem:[#allocation2 + $0x60] sm:$0xff]
    %v76 = vld [vmem:[#allocation2 + $0x68] sm:$0xff]
    %v77 = vld [vmem:[#allocation2 + $0x70] sm:$0xff]
    %v78 = vld [vmem:[#allocation2 + $0x78] sm:$0xff]
    %v79 = vld [vmem:[#allocation2 + $0x80] sm:$0xff]
    %v80 = vld [vmem:[#allocation2 + $0x88] sm:$0xff]
    %v81 = vld [vmem:[#allocation2 + $0x90] sm:$0xff]
    %v82 = vld [vmem:[#allocation2 + $0x98] sm:$0xff]
    %v83 = vld [vmem:[#allocation2 + $0xa0] sm:$0xff]
    %v84 = vld [vmem:[#allocation2 + $0xa8] sm:$0xff]
    %v85 = vld [vmem:[#allocation2 + $0xb0] sm:$0xff]
    %v86 = vld [vmem:[#allocation2 + $0xb8] sm:$0xff]
    %v87 = vld [vmem:[#allocation2 + $0xc0] sm:$0xff]
    %v88 = vld [vmem:[#allocation2 + $0xc8] sm:$0xff]
    %v89 = vld [vmem:[#allocation2 + $0xd0] sm:$0xff]
    %v90 = vld [vmem:[#allocation2 + $0xd8] sm:$0xff]
    %v91 = vld [vmem:[#allocation2 + $0xe0] sm:$0xff]
    %v92 = vld [vmem:[#allocation2 + $0xe8] sm:$0xff]
    %v93 = vld [vmem:[#allocation2 + $0xf0] sm:$0xff]
    %v94 = vld [vmem:[#allocation2 + $0xf8] sm:$0xff]
    %v95 = vld [vmem:[#allocation2 + $0x100] sm:$0xff]
    %v96 = vld [vmem:[#allocation2 + $0x108] sm:$0xff]
    %v97 = vld [vmem:[#allocation2 + $0x110] sm:$0xff]
    %v98 = vld [vmem:[#allocation2 + $0x118] sm:$0xff]
    %v99 = vld [vmem:[#allocation2 + $0x120] sm:$0xff]
    %v100 = vld [vmem:[#allocation2 + $0x128] sm:$0xff]
    %v101 = vld [vmem:[#allocation2 + $0x130] sm:$0xff]
    %v102 = vld [vmem:[#allocation2 + $0x138] sm:$0xff]
    %v103 = vld [vmem:[#allocation2 + $0x140] sm:$0xff]
    %v104 = vld [vmem:[#allocation2 + $0x148] sm:$0xff]
    %v105 = vld [vmem:[#allocation2 + $0x150] sm:$0xff]
    %v106 = vld [vmem:[#allocation2 + $0x158] sm:$0xff]
    %v107 = vld [vmem:[#allocation2 + $0x160] sm:$0xff]
    %v108 = vld [vmem:[#allocation2 + $0x168] sm:$0xff]
    %v109 = vld [vmem:[#allocation2 + $0x170] sm:$0xff]
    %v110 = vld [vmem:[#allocation2 + $0x178] sm:$0xff]
    %v111 = vld [vmem:[#allocation2 + $0x180] sm:$0xff]
    %v112 = vld [vmem:[#allocation2 + $0x188] sm:$0xff]
    %v113 = vld [vmem:[#allocation2 + $0x190] sm:$0xff]
    %v114 = vld [vmem:[#allocation2 + $0x198] sm:$0xff]
    %v115 = vld [vmem:[#allocation2 + $0x1a0] sm:$0xff]
    %v116 = vld [vmem:[#allocation2 + $0x1a8] sm:$0xff]
    %v117 = vld [vmem:[#allocation2 + $0x1b0] sm:$0xff]
    %v118 = vld [vmem:[#allocation2 + $0x1b8] sm:$0xff]
    %v119 = vld [vmem:[#allocation2 + $0x1c0] sm:$0xff]
    %v120 = vld [vmem:[#allocation2 + $0x1c8] sm:$0xff]
    %v121 = vld [vmem:[#allocation2 + $0x1d0] sm:$0xff]
    %v122 = vld [vmem:[#allocation2 + $0x1d8] sm:$0xff]
    %v123 = vld [vmem:[#allocation2 + $0x1e0] sm:$0xff]
    %v124 = vld [vmem:[#allocation2 + $0x1e8] sm:$0xff]
    %v125 = vld [vmem:[#allocation2 + $0x1f0] sm:$0xff]
    %v126 = vld [vmem:[#allocation2 + $0x1f8] sm:$0xff]
    %v127 = vpack.c.bf16 %v71, %v63
    %v128 = vpack.c.bf16 %v72, %v64
    %v129 = vpack.c.bf16 %v73, %v65
    %v130 = vpack.c.bf16 %v74, %v66
    %v131 = vpack.c.bf16 %v75, %v67
    %v132 = vpack.c.bf16 %v76, %v68
    %v133 = vpack.c.bf16 %v77, %v69
    %v134 = vpack.c.bf16 %v78, %v70
    %v135 = vpack.c.bf16 %v87, %v79
    %v136 = vpack.c.bf16 %v88, %v80
    %v137 = vpack.c.bf16 %v89, %v81
    %v138 = vpack.c.bf16 %v90, %v82
    %v139 = vpack.c.bf16 %v91, %v83
    %v140 = vpack.c.bf16 %v92, %v84
    %v141 = vpack.c.bf16 %v93, %v85
    %v142 = vpack.c.bf16 %v94, %v86
    %v143 = vpack.c.bf16 %v103, %v95
    %v144 = vpack.c.bf16 %v104, %v96
    %v145 = vpack.c.bf16 %v105, %v97
    %v146 = vpack.c.bf16 %v106, %v98
    %v147 = vpack.c.bf16 %v107, %v99
    %v148 = vpack.c.bf16 %v108, %v100
    %v149 = vpack.c.bf16 %v109, %v101
    %v150 = vpack.c.bf16 %v110, %v102
    %v151 = vpack.c.bf16 %v119, %v111
    %v152 = vpack.c.bf16 %v120, %v112
    %v153 = vpack.c.bf16 %v121, %v113
    %v154 = vpack.c.bf16 %v122, %v114
    %v155 = vpack.c.bf16 %v123, %v115
    %v156 = vpack.c.bf16 %v124, %v116
    %v157 = vpack.c.bf16 %v125, %v117
    %v158 = vpack.c.bf16 %v126, %v118
    %v159 = vld [vmem:[#allocation5] sm:$0xf]
    %v160 = vld [vmem:[#allocation5 + $0x4] sm:$0xf]
    %v161 = vld [vmem:[#allocation5 + $0x8] sm:$0xf]
    %v162 = vld [vmem:[#allocation5 + $0xc] sm:$0xf]
    %v163 = vld [vmem:[#allocation5 + $0x10] sm:$0xf]
    %v164 = vld [vmem:[#allocation5 + $0x14] sm:$0xf]
    %v165 = vld [vmem:[#allocation5 + $0x18] sm:$0xf]
    %v166 = vld [vmem:[#allocation5 + $0x1c] sm:$0xf]
    %v167 = vld [vmem:[#allocation5 + $0x20] sm:$0xf]
    %v168 = vld [vmem:[#allocation5 + $0x24] sm:$0xf]
    %v169 = vld [vmem:[#allocation5 + $0x28] sm:$0xf]
    %v170 = vld [vmem:[#allocation5 + $0x2c] sm:$0xf]
    %v171 = vld [vmem:[#allocation5 + $0x30] sm:$0xf]
    %v172 = vld [vmem:[#allocation5 + $0x34] sm:$0xf]
    %v173 = vld [vmem:[#allocation5 + $0x38] sm:$0xf]
    %v174 = vld [vmem:[#allocation5 + $0x3c] sm:$0xf]
    %v175 = vld [vmem:[#allocation5 + $0x40] sm:$0xf]
    %v176 = vld [vmem:[#allocation5 + $0x44] sm:$0xf]
    %v177 = vld [vmem:[#allocation5 + $0x48] sm:$0xf]
    %v178 = vld [vmem:[#allocation5 + $0x4c] sm:$0xf]
    %v179 = vld [vmem:[#allocation5 + $0x50] sm:$0xf]
    %v180 = vld [vmem:[#allocation5 + $0x54] sm:$0xf]
    %v181 = vld [vmem:[#allocation5 + $0x58] sm:$0xf]
    %v182 = vld [vmem:[#allocation5 + $0x5c] sm:$0xf]
    %v183 = vld [vmem:[#allocation5 + $0x60] sm:$0xf]
    %v184 = vld [vmem:[#allocation5 + $0x64] sm:$0xf]
    %v185 = vld [vmem:[#allocation5 + $0x68] sm:$0xf]
    %v186 = vld [vmem:[#allocation5 + $0x6c] sm:$0xf]
    %v187 = vld [vmem:[#allocation5 + $0x70] sm:$0xf]
    %v188 = vld [vmem:[#allocation5 + $0x74] sm:$0xf]
    %v189 = vld [vmem:[#allocation5 + $0x78] sm:$0xf]
    %v190 = vld [vmem:[#allocation5 + $0x7c] sm:$0xf]
    %v191 = vld [vmem:[#allocation5 + $0x80] sm:$0xf]
    %v192 = vld [vmem:[#allocation5 + $0x84] sm:$0xf]
    %v193 = vld [vmem:[#allocation5 + $0x88] sm:$0xf]
    %v194 = vld [vmem:[#allocation5 + $0x8c] sm:$0xf]
    %v195 = vld [vmem:[#allocation5 + $0x90] sm:$0xf]
    %v196 = vld [vmem:[#allocation5 + $0x94] sm:$0xf]
    %v197 = vld [vmem:[#allocation5 + $0x98] sm:$0xf]
    %v198 = vld [vmem:[#allocation5 + $0x9c] sm:$0xf]
    %v199 = vld [vmem:[#allocation5 + $0xa0] sm:$0xf]
    %v200 = vld [vmem:[#allocation5 + $0xa4] sm:$0xf]
    %v201 = vld [vmem:[#allocation5 + $0xa8] sm:$0xf]
    %v202 = vld [vmem:[#allocation5 + $0xac] sm:$0xf]
    %v203 = vld [vmem:[#allocation5 + $0xb0] sm:$0xf]
    %v204 = vld [vmem:[#allocation5 + $0xb4] sm:$0xf]
    %v205 = vld [vmem:[#allocation5 + $0xb8] sm:$0xf]
    %v206 = vld [vmem:[#allocation5 + $0xbc] sm:$0xf]
    %v207 = vld [vmem:[#allocation5 + $0xc0] sm:$0xf]
    %v208 = vld [vmem:[#allocation5 + $0xc4] sm:$0xf]
    %v209 = vld [vmem:[#allocation5 + $0xc8] sm:$0xf]
    %v210 = vld [vmem:[#allocation5 + $0xcc] sm:$0xf]
    %v211 = vld [vmem:[#allocation5 + $0xd0] sm:$0xf]
    %v212 = vld [vmem:[#allocation5 + $0xd4] sm:$0xf]
    %v213 = vld [vmem:[#allocation5 + $0xd8] sm:$0xf]
    %v214 = vld [vmem:[#allocation5 + $0xdc] sm:$0xf]
    %v215 = vld [vmem:[#allocation5 + $0xe0] sm:$0xf]
    %v216 = vld [vmem:[#allocation5 + $0xe4] sm:$0xf]
    %v217 = vld [vmem:[#allocation5 + $0xe8] sm:$0xf]
    %v218 = vld [vmem:[#allocation5 + $0xec] sm:$0xf]
    %v219 = vld [vmem:[#allocation5 + $0xf0] sm:$0xf]
    %v220 = vld [vmem:[#allocation5 + $0xf4] sm:$0xf]
    %v221 = vld [vmem:[#allocation5 + $0xf8] sm:$0xf]
    %v222 = vld [vmem:[#allocation5 + $0xfc] sm:$0xf]
    %v223 = vld [vmem:[#allocation5 + $0x100] sm:$0xf]
    %v224 = vld [vmem:[#allocation5 + $0x104] sm:$0xf]
    %v225 = vld [vmem:[#allocation5 + $0x108] sm:$0xf]
    %v226 = vld [vmem:[#allocation5 + $0x10c] sm:$0xf]
    %v227 = vld [vmem:[#allocation5 + $0x110] sm:$0xf]
    %v228 = vld [vmem:[#allocation5 + $0x114] sm:$0xf]
    %v229 = vld [vmem:[#allocation5 + $0x118] sm:$0xf]
    %v230 = vld [vmem:[#allocation5 + $0x11c] sm:$0xf]
    %v231 = vld [vmem:[#allocation5 + $0x120] sm:$0xf]
    %v232 = vld [vmem:[#allocation5 + $0x124] sm:$0xf]
    %v233 = vld [vmem:[#allocation5 + $0x128] sm:$0xf]
    %v234 = vld [vmem:[#allocation5 + $0x12c] sm:$0xf]
    %v235 = vld [vmem:[#allocation5 + $0x130] sm:$0xf]
    %v236 = vld [vmem:[#allocation5 + $0x134] sm:$0xf]
    %v237 = vld [vmem:[#allocation5 + $0x138] sm:$0xf]
    %v238 = vld [vmem:[#allocation5 + $0x13c] sm:$0xf]
    %v239 = vld [vmem:[#allocation5 + $0x140] sm:$0xf]
    %v240 = vld [vmem:[#allocation5 + $0x144] sm:$0xf]
    %v241 = vld [vmem:[#allocation5 + $0x148] sm:$0xf]
    %v242 = vld [vmem:[#allocation5 + $0x14c] sm:$0xf]
    %v243 = vld [vmem:[#allocation5 + $0x150] sm:$0xf]
    %v244 = vld [vmem:[#allocation5 + $0x154] sm:$0xf]
    %v245 = vld [vmem:[#allocation5 + $0x158] sm:$0xf]
    %v246 = vld [vmem:[#allocation5 + $0x15c] sm:$0xf]
    %v247 = vld [vmem:[#allocation5 + $0x160] sm:$0xf]
    %v248 = vld [vmem:[#allocation5 + $0x164] sm:$0xf]
    %v249 = vld [vmem:[#allocation5 + $0x168] sm:$0xf]
    %v250 = vld [vmem:[#allocation5 + $0x16c] sm:$0xf]
    %v251 = vld [vmem:[#allocation5 + $0x170] sm:$0xf]
    %v252 = vld [vmem:[#allocation5 + $0x174] sm:$0xf]
    %v253 = vld [vmem:[#allocation5 + $0x178] sm:$0xf]
    %v254 = vld [vmem:[#allocation5 + $0x17c] sm:$0xf]
    %v255 = vld [vmem:[#allocation5 + $0x180] sm:$0xf]
    %v256 = vld [vmem:[#allocation5 + $0x184] sm:$0xf]
    %v257 = vld [vmem:[#allocation5 + $0x188] sm:$0xf]
    %v258 = vld [vmem:[#allocation5 + $0x18c] sm:$0xf]
    %v259 = vld [vmem:[#allocation5 + $0x190] sm:$0xf]
    %v260 = vld [vmem:[#allocation5 + $0x194] sm:$0xf]
    %v261 = vld [vmem:[#allocation5 + $0x198] sm:$0xf]
    %v262 = vld [vmem:[#allocation5 + $0x19c] sm:$0xf]
    %v263 = vld [vmem:[#allocation5 + $0x1a0] sm:$0xf]
    %v264 = vld [vmem:[#allocation5 + $0x1a4] sm:$0xf]
    %v265 = vld [vmem:[#allocation5 + $0x1a8] sm:$0xf]
    %v266 = vld [vmem:[#allocation5 + $0x1ac] sm:$0xf]
    %v267 = vld [vmem:[#allocation5 + $0x1b0] sm:$0xf]
    %v268 = vld [vmem:[#allocation5 + $0x1b4] sm:$0xf]
    %v269 = vld [vmem:[#allocation5 + $0x1b8] sm:$0xf]
    %v270 = vld [vmem:[#allocation5 + $0x1bc] sm:$0xf]
    %v271 = vld [vmem:[#allocation5 + $0x1c0] sm:$0xf]
    %v272 = vld [vmem:[#allocation5 + $0x1c4] sm:$0xf]
    %v273 = vld [vmem:[#allocation5 + $0x1c8] sm:$0xf]
    %v274 = vld [vmem:[#allocation5 + $0x1cc] sm:$0xf]
    %v275 = vld [vmem:[#allocation5 + $0x1d0] sm:$0xf]
    %v276 = vld [vmem:[#allocation5 + $0x1d4] sm:$0xf]
    %v277 = vld [vmem:[#allocation5 + $0x1d8] sm:$0xf]
    %v278 = vld [vmem:[#allocation5 + $0x1dc] sm:$0xf]
    %v279 = vld [vmem:[#allocation5 + $0x1e0] sm:$0xf]
    %v280 = vld [vmem:[#allocation5 + $0x1e4] sm:$0xf]
    %v281 = vld [vmem:[#allocation5 + $0x1e8] sm:$0xf]
    %v282 = vld [vmem:[#allocation5 + $0x1ec] sm:$0xf]
    %v283 = vld [vmem:[#allocation5 + $0x1f0] sm:$0xf]
    %v284 = vld [vmem:[#allocation5 + $0x1f4] sm:$0xf]
    %v285 = vld [vmem:[#allocation5 + $0x1f8] sm:$0xf]
    %v286 = vld [vmem:[#allocation5 + $0x1fc] sm:$0xf]
    %v287 = vld [vmem:[%s2] sm:$0x1]
    %v289 = vlaneseq
    %v290 = vshrl.u32 %v289, 7
    %v291 = vsub.s32 0, %v290
    %v292 = vrot.slane %v287, %v291
    %v422 = vunpack.c.l.b16 %v159
    %v423 = vunpack.c.l.b16 %v160
    %v424 = vunpack.c.l.b16 %v161
    %v425 = vunpack.c.l.b16 %v162
    %v426 = vunpack.c.l.b16 %v163
    %v427 = vunpack.c.l.b16 %v164
    %v428 = vunpack.c.l.b16 %v165
    %v429 = vunpack.c.l.b16 %v166
    %v430 = vunpack.c.l.b16 %v167
    %v431 = vunpack.c.l.b16 %v168
    %v432 = vunpack.c.l.b16 %v169
    %v433 = vunpack.c.l.b16 %v170
    %v434 = vunpack.c.l.b16 %v171
    %v435 = vunpack.c.l.b16 %v172
    %v436 = vunpack.c.l.b16 %v173
    %v437 = vunpack.c.l.b16 %v174
    %v438 = vunpack.c.l.b16 %v175
    %v439 = vunpack.c.l.b16 %v176
    %v440 = vunpack.c.l.b16 %v177
    %v441 = vunpack.c.l.b16 %v178
    %v442 = vunpack.c.l.b16 %v179
    %v443 = vunpack.c.l.b16 %v180
    %v444 = vunpack.c.l.b16 %v181
    %v445 = vunpack.c.l.b16 %v182
    %v446 = vunpack.c.l.b16 %v183
    %v447 = vunpack.c.l.b16 %v184
    %v448 = vunpack.c.l.b16 %v185
    %v449 = vunpack.c.l.b16 %v186
    %v450 = vunpack.c.l.b16 %v187
    %v451 = vunpack.c.l.b16 %v188
    %v452 = vunpack.c.l.b16 %v189
    %v453 = vunpack.c.l.b16 %v190
    %v454 = vunpack.c.l.b16 %v191
    %v455 = vunpack.c.l.b16 %v192
    %v456 = vunpack.c.l.b16 %v193
    %v457 = vunpack.c.l.b16 %v194
    %v458 = vunpack.c.l.b16 %v195
    %v459 = vunpack.c.l.b16 %v196
    %v460 = vunpack.c.l.b16 %v197
    %v461 = vunpack.c.l.b16 %v198
    %v462 = vunpack.c.l.b16 %v199
    %v463 = vunpack.c.l.b16 %v200
    %v464 = vunpack.c.l.b16 %v201
    %v465 = vunpack.c.l.b16 %v202
    %v466 = vunpack.c.l.b16 %v203
    %v467 = vunpack.c.l.b16 %v204
    %v468 = vunpack.c.l.b16 %v205
    %v469 = vunpack.c.l.b16 %v206
    %v470 = vunpack.c.l.b16 %v207
    %v471 = vunpack.c.l.b16 %v208
    %v472 = vunpack.c.l.b16 %v209
    %v473 = vunpack.c.l.b16 %v210
    %v474 = vunpack.c.l.b16 %v211
    %v475 = vunpack.c.l.b16 %v212
    %v476 = vunpack.c.l.b16 %v213
    %v477 = vunpack.c.l.b16 %v214
    %v478 = vunpack.c.l.b16 %v215
    %v479 = vunpack.c.l.b16 %v216
    %v480 = vunpack.c.l.b16 %v217
    %v481 = vunpack.c.l.b16 %v218
    %v482 = vunpack.c.l.b16 %v219
    %v483 = vunpack.c.l.b16 %v220
    %v484 = vunpack.c.l.b16 %v221
    %v485 = vunpack.c.l.b16 %v222
    %v486 = vunpack.c.l.b16 %v223
    %v487 = vunpack.c.l.b16 %v224
    %v488 = vunpack.c.l.b16 %v225
    %v489 = vunpack.c.l.b16 %v226
    %v490 = vunpack.c.l.b16 %v227
    %v491 = vunpack.c.l.b16 %v228
    %v492 = vunpack.c.l.b16 %v229
    %v493 = vunpack.c.l.b16 %v230
    %v494 = vunpack.c.l.b16 %v231
    %v495 = vunpack.c.l.b16 %v232
    %v496 = vunpack.c.l.b16 %v233
    %v497 = vunpack.c.l.b16 %v234
    %v498 = vunpack.c.l.b16 %v235
    %v499 = vunpack.c.l.b16 %v236
    %v500 = vunpack.c.l.b16 %v237
    %v501 = vunpack.c.l.b16 %v238
    %v502 = vunpack.c.l.b16 %v239
    %v503 = vunpack.c.l.b16 %v240
    %v504 = vunpack.c.l.b16 %v241
    %v505 = vunpack.c.l.b16 %v242
    %v506 = vunpack.c.l.b16 %v243
    %v507 = vunpack.c.l.b16 %v244
    %v508 = vunpack.c.l.b16 %v245
    %v509 = vunpack.c.l.b16 %v246
    %v510 = vunpack.c.l.b16 %v247
    %v511 = vunpack.c.l.b16 %v248
    %v512 = vunpack.c.l.b16 %v249
    %v513 = vunpack.c.l.b16 %v250
    %v514 = vunpack.c.l.b16 %v251
    %v515 = vunpack.c.l.b16 %v252
    %v516 = vunpack.c.l.b16 %v253
    %v517 = vunpack.c.l.b16 %v254
    %v518 = vunpack.c.l.b16 %v255
    %v519 = vunpack.c.l.b16 %v256
    %v520 = vunpack.c.l.b16 %v257
    %v521 = vunpack.c.l.b16 %v258
    %v522 = vunpack.c.l.b16 %v259
    %v523 = vunpack.c.l.b16 %v260
    %v524 = vunpack.c.l.b16 %v261
    %v525 = vunpack.c.l.b16 %v262
    %v526 = vunpack.c.l.b16 %v263
    %v527 = vunpack.c.l.b16 %v264
    %v528 = vunpack.c.l.b16 %v265
    %v529 = vunpack.c.l.b16 %v266
    %v530 = vunpack.c.l.b16 %v267
    %v531 = vunpack.c.l.b16 %v268
    %v532 = vunpack.c.l.b16 %v269
    %v533 = vunpack.c.l.b16 %v270
    %v534 = vunpack.c.l.b16 %v271
    %v535 = vunpack.c.l.b16 %v272
    %v536 = vunpack.c.l.b16 %v273
    %v537 = vunpack.c.l.b16 %v274
    %v538 = vunpack.c.l.b16 %v275
    %v539 = vunpack.c.l.b16 %v276
    %v540 = vunpack.c.l.b16 %v277
    %v541 = vunpack.c.l.b16 %v278
    %v542 = vunpack.c.l.b16 %v279
    %v543 = vunpack.c.l.b16 %v280
    %v544 = vunpack.c.l.b16 %v281
    %v545 = vunpack.c.l.b16 %v282
    %v546 = vunpack.c.l.b16 %v283
    %v547 = vunpack.c.l.b16 %v284
    %v548 = vunpack.c.l.b16 %v285
    %v549 = vunpack.c.l.b16 %v286
    %v550 = vpack.c.b16 %v423, %v422
    %v551 = vpack.c.b16 %v425, %v424
    %v552 = vpack.c.b16 %v427, %v426
    %v553 = vpack.c.b16 %v429, %v428
    %v554 = vpack.c.b16 %v431, %v430
    %v555 = vpack.c.b16 %v433, %v432
    %v556 = vpack.c.b16 %v435, %v434
    %v557 = vpack.c.b16 %v437, %v436
    %v558 = vpack.c.b16 %v439, %v438
    %v559 = vpack.c.b16 %v441, %v440
    %v560 = vpack.c.b16 %v443, %v442
    %v561 = vpack.c.b16 %v445, %v444
    %v562 = vpack.c.b16 %v447, %v446
    %v563 = vpack.c.b16 %v449, %v448
    %v564 = vpack.c.b16 %v451, %v450
    %v565 = vpack.c.b16 %v453, %v452
    %v566 = vpack.c.b16 %v455, %v454
    %v567 = vpack.c.b16 %v457, %v456
    %v568 = vpack.c.b16 %v459, %v458
    %v569 = vpack.c.b16 %v461, %v460
    %v570 = vpack.c.b16 %v463, %v462
    %v571 = vpack.c.b16 %v465, %v464
    %v572 = vpack.c.b16 %v467, %v466
    %v573 = vpack.c.b16 %v469, %v468
    %v574 = vpack.c.b16 %v471, %v470
    %v575 = vpack.c.b16 %v473, %v472
    %v576 = vpack.c.b16 %v475, %v474
    %v577 = vpack.c.b16 %v477, %v476
    %v578 = vpack.c.b16 %v479, %v478
    %v579 = vpack.c.b16 %v481, %v480
    %v580 = vpack.c.b16 %v483, %v482
    %v581 = vpack.c.b16 %v485, %v484
    %v582 = vpack.c.b16 %v487, %v486
    %v583 = vpack.c.b16 %v489, %v488
    %v584 = vpack.c.b16 %v491, %v490
    %v585 = vpack.c.b16 %v493, %v492
    %v586 = vpack.c.b16 %v495, %v494
    %v587 = vpack.c.b16 %v497, %v496
    %v588 = vpack.c.b16 %v499, %v498
    %v589 = vpack.c.b16 %v501, %v500
    %v590 = vpack.c.b16 %v503, %v502
    %v591 = vpack.c.b16 %v505, %v504
    %v592 = vpack.c.b16 %v507, %v506
    %v593 = vpack.c.b16 %v509, %v508
    %v594 = vpack.c.b16 %v511, %v510
    %v595 = vpack.c.b16 %v513, %v512
    %v596 = vpack.c.b16 %v515, %v514
    %v597 = vpack.c.b16 %v517, %v516
    %v598 = vpack.c.b16 %v519, %v518
    %v599 = vpack.c.b16 %v521, %v520
    %v600 = vpack.c.b16 %v523, %v522
    %v601 = vpack.c.b16 %v525, %v524
    %v602 = vpack.c.b16 %v527, %v526
    %v603 = vpack.c.b16 %v529, %v528
    %v604 = vpack.c.b16 %v531, %v530
    %v605 = vpack.c.b16 %v533, %v532
    %v606 = vpack.c.b16 %v535, %v534
    %v607 = vpack.c.b16 %v537, %v536
    %v608 = vpack.c.b16 %v539, %v538
    %v609 = vpack.c.b16 %v541, %v540
    %v610 = vpack.c.b16 %v543, %v542
    %v611 = vpack.c.b16 %v545, %v544
    %v612 = vpack.c.b16 %v547, %v546
    %v613 = vpack.c.b16 %v549, %v548
    %678 = vmatprep.subr.bf16.mxu0 0
    %679 = vmatpush1.bf16.msra.mxu0 %v550
    %680 = vmatprep.subr.bf16.mxu0 0
    %681 = vmatpush1.bf16.msra.mxu0 %v551
    %682 = vmatprep.subr.bf16.mxu0 0
    %683 = vmatpush1.bf16.msra.mxu0 %v552
    %684 = vmatprep.subr.bf16.mxu0 0
    %685 = vmatpush1.bf16.msra.mxu0 %v553
    %686 = vmatprep.subr.bf16.mxu0 0
    %687 = vmatpush1.bf16.msra.mxu0 %v554
    %688 = vmatprep.subr.bf16.mxu0 0
    %689 = vmatpush1.bf16.msra.mxu0 %v555
    %690 = vmatprep.subr.bf16.mxu0 0
    %691 = vmatpush1.bf16.msra.mxu0 %v556
    %692 = vmatprep.subr.bf16.mxu0 0
    %693 = vmatpush1.bf16.msra.mxu0 %v557
    %694 = vmatprep.subr.bf16.mxu0 0
    %695 = vmatpush1.bf16.msra.mxu0 %v558
    %696 = vmatprep.subr.bf16.mxu0 0
    %697 = vmatpush1.bf16.msra.mxu0 %v559
    %698 = vmatprep.subr.bf16.mxu0 0
    %699 = vmatpush1.bf16.msra.mxu0 %v560
    %700 = vmatprep.subr.bf16.mxu0 0
    %701 = vmatpush1.bf16.msra.mxu0 %v561
    %702 = vmatprep.subr.bf16.mxu0 0
    %703 = vmatpush1.bf16.msra.mxu0 %v562
    %704 = vmatprep.subr.bf16.mxu0 0
    %705 = vmatpush1.bf16.msra.mxu0 %v563
    %706 = vmatprep.subr.bf16.mxu0 0
    %707 = vmatpush1.bf16.msra.mxu0 %v564
    %708 = vmatprep.subr.bf16.mxu0 0
    %709 = vmatpush1.bf16.msra.mxu0 %v565
    %710 = vmatprep.mubr.bf16.mxu0 %v128
    %711 = vmatmul.mubr.bf16.gmra.mrb[0].mxu0 %v127
    %v712 = vpop.f32.mrb[0].mxu0
    %v713 = vadd.f32 %v292, %v712
    %v714 = vpop.f32.mrb[0].mxu0
    %v715 = vpop.f32.mrb[0].mxu0
    %v716 = vadd.f32 %v292, %v715
    %v717 = vpop.f32.mrb[0].mxu0
    %718 = vmatprep.mubr.bf16.mxu0 %v136
    %719 = vmatmul.mubr.bf16.gmra.mrb[0].mxu0 %v135
    %v720 = vpop.f32.mrb[0].mxu0
    %v721 = vadd.f32 %v292, %v720
    %v722 = vpop.f32.mrb[0].mxu0
    %v723 = vpop.f32.mrb[0].mxu0
    %v724 = vadd.f32 %v292, %v723
    %v725 = vpop.f32.mrb[0].mxu0
    %726 = vmatprep.mubr.bf16.mxu0 %v144
    %727 = vmatmul.mubr.bf16.gmra.mrb[0].mxu0 %v143
    %v728 = vpop.f32.mrb[0].mxu0
    %v729 = vadd.f32 %v292, %v728
    %v730 = vpop.f32.mrb[0].mxu0
    %v731 = vpop.f32.mrb[0].mxu0
    %v732 = vadd.f32 %v292, %v731
    %v733 = vpop.f32.mrb[0].mxu0
    %734 = vmatprep.mubr.bf16.mxu0 %v152
    %735 = vmatmul.mubr.bf16.gmra.mrb[0].mxu0 %v151
    %v736 = vpop.f32.mrb[0].mxu0
    %v737 = vadd.f32 %v292, %v736
    %v738 = vpop.f32.mrb[0].mxu0
    %v739 = vpop.f32.mrb[0].mxu0
    %v740 = vadd.f32 %v292, %v739
    %v741 = vpop.f32.mrb[0].mxu0
    %742 = vdwg.mxu0
    %743 = vmatprep.subr.bf16.mxu0 0
    %744 = vmatpush1.bf16.msra.mxu0 %v566
    %745 = vmatprep.subr.bf16.mxu0 0
    %746 = vmatpush1.bf16.msra.mxu0 %v567
    %747 = vmatprep.subr.bf16.mxu0 0
    %748 = vmatpush1.bf16.msra.mxu0 %v568
    %749 = vmatprep.subr.bf16.mxu0 0
    %750 = vmatpush1.bf16.msra.mxu0 %v569
    %751 = vmatprep.subr.bf16.mxu0 0
    %752 = vmatpush1.bf16.msra.mxu0 %v570
    %753 = vmatprep.subr.bf16.mxu0 0
    %754 = vmatpush1.bf16.msra.mxu0 %v571
    %755 = vmatprep.subr.bf16.mxu0 0
    %756 = vmatpush1.bf16.msra.mxu0 %v572
    %757 = vmatprep.subr.bf16.mxu0 0
    %758 = vmatpush1.bf16.msra.mxu0 %v573
    %759 = vmatprep.subr.bf16.mxu0 0
    %760 = vmatpush1.bf16.msra.mxu0 %v574
    %761 = vmatprep.subr.bf16.mxu0 0
    %762 = vmatpush1.bf16.msra.mxu0 %v575
    %763 = vmatprep.subr.bf16.mxu0 0
    %764 = vmatpush1.bf16.msra.mxu0 %v576
    %765 = vmatprep.subr.bf16.mxu0 0
    %766 = vmatpush1.bf16.msra.mxu0 %v577
    %767 = vmatprep.subr.bf16.mxu0 0
    %768 = vmatpush1.bf16.msra.mxu0 %v578
    %769 = vmatprep.subr.bf16.mxu0 0
    %770 = vmatpush1.bf16.msra.mxu0 %v579
    %771 = vmatprep.subr.bf16.mxu0 0
    %772 = vmatpush1.bf16.msra.mxu0 %v580
    %773 = vmatprep.subr.bf16.mxu0 0
    %774 = vmatpush1.bf16.msra.mxu0 %v581
    %775 = vmatprep.mubr.bf16.mxu0 %v130
    %776 = vmatmul.mubr.bf16.gmra.mrb[0].mxu0 %v129
    %v777 = vpop.f32.mrb[0].mxu0
    %v778 = vadd.f32 %v713, %v777
    %v779 = vpop.f32.mrb[0].mxu0
    %v780 = vpop.f32.mrb[0].mxu0
    %v781 = vadd.f32 %v716, %v780
    %v782 = vpop.f32.mrb[0].mxu0
    %783 = vmatprep.mubr.bf16.mxu0 %v138
    %784 = vmatmul.mubr.bf16.gmra.mrb[0].mxu0 %v137
    %v785 = vpop.f32.mrb[0].mxu0
    %v786 = vadd.f32 %v721, %v785
    %v787 = vpop.f32.mrb[0].mxu0
    %v788 = vpop.f32.mrb[0].mxu0
    %v789 = vadd.f32 %v724, %v788
    %v790 = vpop.f32.mrb[0].mxu0
    %791 = vmatprep.mubr.bf16.mxu0 %v146
    %792 = vmatmul.mubr.bf16.gmra.mrb[0].mxu0 %v145
    %v793 = vpop.f32.mrb[0].mxu0
    %v794 = vadd.f32 %v729, %v793
    %v795 = vpop.f32.mrb[0].mxu0
    %v796 = vpop.f32.mrb[0].mxu0
    %v797 = vadd.f32 %v732, %v796
    %v798 = vpop.f32.mrb[0].mxu0
    %799 = vmatprep.mubr.bf16.mxu0 %v154
    %800 = vmatmul.mubr.bf16.gmra.mrb[0].mxu0 %v153
    %v801 = vpop.f32.mrb[0].mxu0
    %v802 = vadd.f32 %v737, %v801
    %v803 = vpop.f32.mrb[0].mxu0
    %v804 = vpop.f32.mrb[0].mxu0
    %v805 = vadd.f32 %v740, %v804
    %v806 = vpop.f32.mrb[0].mxu0
    %807 = vdwg.mxu0
    %808 = vmatprep.subr.bf16.mxu0 0
    %809 = vmatpush1.bf16.msra.mxu0 %v582
    %810 = vmatprep.subr.bf16.mxu0 0
    %811 = vmatpush1.bf16.msra.mxu0 %v583
    %812 = vmatprep.subr.bf16.mxu0 0
    %813 = vmatpush1.bf16.msra.mxu0 %v584
    %814 = vmatprep.subr.bf16.mxu0 0
    %815 = vmatpush1.bf16.msra.mxu0 %v585
    %816 = vmatprep.subr.bf16.mxu0 0
    %817 = vmatpush1.bf16.msra.mxu0 %v586
    %818 = vmatprep.subr.bf16.mxu0 0
    %819 = vmatpush1.bf16.msra.mxu0 %v587
    %820 = vmatprep.subr.bf16.mxu0 0
    %821 = vmatpush1.bf16.msra.mxu0 %v588
    %822 = vmatprep.subr.bf16.mxu0 0
    %823 = vmatpush1.bf16.msra.mxu0 %v589
    %824 = vmatprep.subr.bf16.mxu0 0
    %825 = vmatpush1.bf16.msra.mxu0 %v590
    %826 = vmatprep.subr.bf16.mxu0 0
    %827 = vmatpush1.bf16.msra.mxu0 %v591
    %828 = vmatprep.subr.bf16.mxu0 0
    %829 = vmatpush1.bf16.msra.mxu0 %v592
    %830 = vmatprep.subr.bf16.mxu0 0
    %831 = vmatpush1.bf16.msra.mxu0 %v593
    %832 = vmatprep.subr.bf16.mxu0 0
    %833 = vmatpush1.bf16.msra.mxu0 %v594
    %834 = vmatprep.subr.bf16.mxu0 0
    %835 = vmatpush1.bf16.msra.mxu0 %v595
    %836 = vmatprep.subr.bf16.mxu0 0
    %837 = vmatpush1.bf16.msra.mxu0 %v596
    %838 = vmatprep.subr.bf16.mxu0 0
    %839 = vmatpush1.bf16.msra.mxu0 %v597
    %840 = vmatprep.mubr.bf16.mxu0 %v132
    %841 = vmatmul.mubr.bf16.gmra.mrb[0].mxu0 %v131
    %v842 = vpop.f32.mrb[0].mxu0
    %v843 = vadd.f32 %v778, %v842
    %v844 = vpop.f32.mrb[0].mxu0
    %v845 = vpop.f32.mrb[0].mxu0
    %v846 = vadd.f32 %v781, %v845
    %v847 = vpop.f32.mrb[0].mxu0
    %848 = vmatprep.mubr.bf16.mxu0 %v140
    %849 = vmatmul.mubr.bf16.gmra.mrb[0].mxu0 %v139
    %v850 = vpop.f32.mrb[0].mxu0
    %v851 = vadd.f32 %v786, %v850
    %v852 = vpop.f32.mrb[0].mxu0
    %v853 = vpop.f32.mrb[0].mxu0
    %v854 = vadd.f32 %v789, %v853
    %v855 = vpop.f32.mrb[0].mxu0
    %856 = vmatprep.mubr.bf16.mxu0 %v148
    %857 = vmatmul.mubr.bf16.gmra.mrb[0].mxu0 %v147
    %v858 = vpop.f32.mrb[0].mxu0
    %v859 = vadd.f32 %v794, %v858
    %v860 = vpop.f32.mrb[0].mxu0
    %v861 = vpop.f32.mrb[0].mxu0
    %v862 = vadd.f32 %v797, %v861
    %v863 = vpop.f32.mrb[0].mxu0
    %864 = vmatprep.mubr.bf16.mxu0 %v156
    %865 = vmatmul.mubr.bf16.gmra.mrb[0].mxu0 %v155
    %v866 = vpop.f32.mrb[0].mxu0
    %v867 = vadd.f32 %v802, %v866
    %v868 = vpop.f32.mrb[0].mxu0
    %v869 = vpop.f32.mrb[0].mxu0
    %v870 = vadd.f32 %v805, %v869
    %v871 = vpop.f32.mrb[0].mxu0
    %872 = vdwg.mxu0
    %873 = vmatprep.subr.bf16.mxu0 0
    %874 = vmatpush1.bf16.msra.mxu0 %v598
    %875 = vmatprep.subr.bf16.mxu0 0
    %876 = vmatpush1.bf16.msra.mxu0 %v599
    %877 = vmatprep.subr.bf16.mxu0 0
    %878 = vmatpush1.bf16.msra.mxu0 %v600
    %879 = vmatprep.subr.bf16.mxu0 0
    %880 = vmatpush1.bf16.msra.mxu0 %v601
    %881 = vmatprep.subr.bf16.mxu0 0
    %882 = vmatpush1.bf16.msra.mxu0 %v602
    %883 = vmatprep.subr.bf16.mxu0 0
    %884 = vmatpush1.bf16.msra.mxu0 %v603
    %885 = vmatprep.subr.bf16.mxu0 0
    %886 = vmatpush1.bf16.msra.mxu0 %v604
    %887 = vmatprep.subr.bf16.mxu0 0
    %888 = vmatpush1.bf16.msra.mxu0 %v605
    %889 = vmatprep.subr.bf16.mxu0 0
    %890 = vmatpush1.bf16.msra.mxu0 %v606
    %891 = vmatprep.subr.bf16.mxu0 0
    %892 = vmatpush1.bf16.msra.mxu0 %v607
    %893 = vmatprep.subr.bf16.mxu0 0
    %894 = vmatpush1.bf16.msra.mxu0 %v608
    %895 = vmatprep.subr.bf16.mxu0 0
    %896 = vmatpush1.bf16.msra.mxu0 %v609
    %897 = vmatprep.subr.bf16.mxu0 0
    %898 = vmatpush1.bf16.msra.mxu0 %v610
    %899 = vmatprep.subr.bf16.mxu0 0
    %900 = vmatpush1.bf16.msra.mxu0 %v611
    %901 = vmatprep.subr.bf16.mxu0 0
    %902 = vmatpush1.bf16.msra.mxu0 %v612
    %903 = vmatprep.subr.bf16.mxu0 0
    %904 = vmatpush1.bf16.msra.mxu0 %v613
    %905 = vmatprep.mubr.bf16.mxu0 %v134
    %906 = vmatmul.mubr.bf16.gmra.mrb[0].mxu0 %v133
    %v907 = vpop.f32.mrb[0].mxu0
    %v908 = vadd.f32 %v843, %v907
    %v909 = vpop.f32.mrb[0].mxu0
    %v910 = vpop.f32.mrb[0].mxu0
    %v911 = vadd.f32 %v846, %v910
    %v912 = vpop.f32.mrb[0].mxu0
    %913 = vmatprep.mubr.bf16.mxu0 %v142
    %914 = vmatmul.mubr.bf16.gmra.mrb[0].mxu0 %v141
    %v915 = vpop.f32.mrb[0].mxu0
    %v916 = vadd.f32 %v851, %v915
    %v917 = vpop.f32.mrb[0].mxu0
    %v918 = vpop.f32.mrb[0].mxu0
    %v919 = vadd.f32 %v854, %v918
    %v920 = vpop.f32.mrb[0].mxu0
    %921 = vmatprep.mubr.bf16.mxu0 %v150
    %922 = vmatmul.mubr.bf16.gmra.mrb[0].mxu0 %v149
    %v923 = vpop.f32.mrb[0].mxu0
    %v924 = vadd.f32 %v859, %v923
    %v925 = vpop.f32.mrb[0].mxu0
    %v926 = vpop.f32.mrb[0].mxu0
    %v927 = vadd.f32 %v862, %v926
    %v928 = vpop.f32.mrb[0].mxu0
    %929 = vmatprep.mubr.bf16.mxu0 %v158
    %930 = vmatmul.mubr.bf16.gmra.mrb[0].mxu0 %v157
    %v931 = vpop.f32.mrb[0].mxu0
    %v932 = vadd.f32 %v867, %v931
    %v933 = vpop.f32.mrb[0].mxu0
    %v934 = vpop.f32.mrb[0].mxu0
    %v935 = vadd.f32 %v870, %v934
    %v936 = vpop.f32.mrb[0].mxu0
    %937 = vdwg.mxu0
    %v938 = vmax.f32 %v908, 0.0
    %v939 = vmax.f32 %v911, 0.0
    %v940 = vmax.f32 %v916, 0.0
    %v941 = vmax.f32 %v919, 0.0
    %v942 = vmax.f32 %v924, 0.0
    %v943 = vmax.f32 %v927, 0.0
    %v944 = vmax.f32 %v932, 0.0
    %v945 = vmax.f32 %v935, 0.0
    %v946 = vpack.c.bf16 %v939, %v938
    %v947 = vpack.c.bf16 %v941, %v940
    %v948 = vpack.c.bf16 %v943, %v942
    %v949 = vpack.c.bf16 %v945, %v944
    %v950 = vld [vmem:[#allocation7] sm:$0xf]
    %v951 = vld [vmem:[#allocation7 + $0x4] sm:$0xf]
    %v952 = vld [vmem:[#allocation7 + $0x8] sm:$0xf]
    %v953 = vld [vmem:[#allocation7 + $0xc] sm:$0xf]
    %v954 = vld [vmem:[#allocation7 + $0x10] sm:$0xf]
    %v955 = vld [vmem:[#allocation7 + $0x14] sm:$0xf]
    %v956 = vld [vmem:[#allocation7 + $0x18] sm:$0xf]
    %v957 = vld [vmem:[#allocation7 + $0x1c] sm:$0xf]
    %v958 = vld [vmem:[#allocation7 + $0x20] sm:$0xf]
    %v959 = vld [vmem:[#allocation7 + $0x24] sm:$0xf]
    %v960 = vld [vmem:[#allocation7 + $0x28] sm:$0xf]
    %v961 = vld [vmem:[#allocation7 + $0x2c] sm:$0xf]
    %v962 = vld [vmem:[#allocation7 + $0x30] sm:$0xf]
    %v963 = vld [vmem:[#allocation7 + $0x34] sm:$0xf]
    %v964 = vld [vmem:[#allocation7 + $0x38] sm:$0xf]
    %v965 = vld [vmem:[#allocation7 + $0x3c] sm:$0xf]
    %v966 = vld [vmem:[%s4] sm:$0x1]
    %v968 = vlaneseq
    %v969 = vshrl.u32 %v968, 7
    %v970 = vsub.s32 0, %v969
    %v971 = vrot.slane %v966, %v970
    %v989 = vunpack.c.l.b16 %v950
    %v990 = vunpack.c.l.b16 %v951
    %v991 = vunpack.c.l.b16 %v952
    %v992 = vunpack.c.l.b16 %v953
    %v993 = vunpack.c.l.b16 %v954
    %v994 = vunpack.c.l.b16 %v955
    %v995 = vunpack.c.l.b16 %v956
    %v996 = vunpack.c.l.b16 %v957
    %v997 = vunpack.c.l.b16 %v958
    %v998 = vunpack.c.l.b16 %v959
    %v999 = vunpack.c.l.b16 %v960
    %v1000 = vunpack.c.l.b16 %v961
    %v1001 = vunpack.c.l.b16 %v962
    %v1002 = vunpack.c.l.b16 %v963
    %v1003 = vunpack.c.l.b16 %v964
    %v1004 = vunpack.c.l.b16 %v965
    %v1005 = vpack.c.b16 %v990, %v989
    %v1006 = vpack.c.b16 %v992, %v991
    %v1007 = vpack.c.b16 %v994, %v993
    %v1008 = vpack.c.b16 %v996, %v995
    %v1009 = vpack.c.b16 %v998, %v997
    %v1010 = vpack.c.b16 %v1000, %v999
    %v1011 = vpack.c.b16 %v1002, %v1001
    %v1012 = vpack.c.b16 %v1004, %v1003
    %1021 = vmatprep.subr.bf16.mxu0 0
    %1022 = vmatpush1.bf16.msra.mxu0 %v1005
    %1023 = vmatprep.subr.bf16.mxu0 0
    %1024 = vmatpush1.bf16.msra.mxu0 %v1006
    %1025 = vmatprep.subr.bf16.mxu0 0
    %1026 = vmatpush1.bf16.msra.mxu0 %v1007
    %1027 = vmatprep.subr.bf16.mxu0 0
    %1028 = vmatpush1.bf16.msra.mxu0 %v1008
    %1029 = vmatprep.subr.bf16.mxu0 0
    %1030 = vmatpush1.bf16.msra.mxu0 %v1009
    %1031 = vmatprep.subr.bf16.mxu0 0
    %1032 = vmatpush1.bf16.msra.mxu0 %v1010
    %1033 = vmatprep.subr.bf16.mxu0 0
    %1034 = vmatpush1.bf16.msra.mxu0 %v1011
    %1035 = vmatprep.subr.bf16.mxu0 0
    %1036 = vmatpush1.bf16.msra.mxu0 %v1012
    %1037 = vmatprep.subr.bf16.mxu0 0
    %1038 = vmatpush1.bf16.msra.mxu0 0
    %1039 = vmatprep.subr.bf16.mxu0 0
    %1040 = vmatpush1.bf16.msra.mxu0 0
    %1041 = vmatprep.subr.bf16.mxu0 0
    %1042 = vmatpush1.bf16.msra.mxu0 0
    %1043 = vmatprep.subr.bf16.mxu0 0
    %1044 = vmatpush1.bf16.msra.mxu0 0
    %1045 = vmatprep.subr.bf16.mxu0 0
    %1046 = vmatpush1.bf16.msra.mxu0 0
    %1047 = vmatprep.subr.bf16.mxu0 0
    %1048 = vmatpush1.bf16.msra.mxu0 0
    %1049 = vmatprep.subr.bf16.mxu0 0
    %1050 = vmatpush1.bf16.msra.mxu0 0
    %1051 = vmatprep.subr.bf16.mxu0 0
    %1052 = vmatpush1.bf16.msra.mxu0 0
    %1053 = vmatprep.mubr.bf16.mxu0 0
    %1054 = vmatmul.mubr.bf16.gmra.mrb[0].mxu0 %v946
    %v1055 = vpop.f32.mrb[0].mxu0
    %v1056 = vadd.f32 %v971, %v1055
    %v1057 = vpop.f32.mrb[0].mxu0
    %v1058 = vpop.f32.mrb[0].mxu0
    %v1059 = vadd.f32 %v971, %v1058
    %v1060 = vpop.f32.mrb[0].mxu0
    %1061 = vmatprep.mubr.bf16.mxu0 0
    %1062 = vmatmul.mubr.bf16.gmra.mrb[0].mxu0 %v947
    %v1063 = vpop.f32.mrb[0].mxu0
    %v1064 = vadd.f32 %v971, %v1063
    %v1065 = vpop.f32.mrb[0].mxu0
    %v1066 = vpop.f32.mrb[0].mxu0
    %v1067 = vadd.f32 %v971, %v1066
    %v1068 = vpop.f32.mrb[0].mxu0
    %1069 = vmatprep.mubr.bf16.mxu0 0
    %1070 = vmatmul.mubr.bf16.gmra.mrb[0].mxu0 %v948
    %v1071 = vpop.f32.mrb[0].mxu0
    %v1072 = vadd.f32 %v971, %v1071
    %v1073 = vpop.f32.mrb[0].mxu0
    %v1074 = vpop.f32.mrb[0].mxu0
    %v1075 = vadd.f32 %v971, %v1074
    %v1076 = vpop.f32.mrb[0].mxu0
    %1077 = vmatprep.mubr.bf16.mxu0 0
    %1078 = vmatmul.mubr.bf16.gmra.mrb[0].mxu0 %v949
    %v1079 = vpop.f32.mrb[0].mxu0
    %v1080 = vadd.f32 %v971, %v1079
    %v1081 = vpop.f32.mrb[0].mxu0
    %v1082 = vpop.f32.mrb[0].mxu0
    %v1083 = vadd.f32 %v971, %v1082
    %v1084 = vpop.f32.mrb[0].mxu0
    %1085 = vdwg.mxu0
    %v1086 = vmax.f32 %v1056, 0.0
    %v1087 = vmax.f32 %v1059, 0.0
    %v1088 = vmax.f32 %v1064, 0.0
    %v1089 = vmax.f32 %v1067, 0.0
    %v1090 = vmax.f32 %v1072, 0.0
    %v1091 = vmax.f32 %v1075, 0.0
    %v1092 = vmax.f32 %v1080, 0.0
    %v1093 = vmax.f32 %v1083, 0.0
    %v1094 = vlaneseq
    %v1095 = vand.u32 %v1094, 127
    %vm1096 = vcmp.lt.s32.totalorder %v1095, 20
    %v1097 = vsel %vm1096, %v1086, -1e+30
    %v1098 = vsel %vm1096, %v1087, -1e+30
    %v1099 = vsel %vm1096, %v1088, -1e+30
    %v1100 = vsel %vm1096, %v1089, -1e+30
    %v1101 = vsel %vm1096, %v1090, -1e+30
    %v1102 = vsel %vm1096, %v1091, -1e+30
    %v1103 = vsel %vm1096, %v1092, -1e+30
    %v1104 = vsel %vm1096, %v1093, -1e+30
    %1105 = vmax.xlane.f32.xlu0 %v1097
    %v1106 = vpop.xlane.xlu0 %1105
    %1107 = vmax.xlane.f32.xlu0 %v1098
    %v1108 = vpop.xlane.xlu0 %1107
    %1109 = vmax.xlane.f32.xlu0 %v1099
    %v1110 = vpop.xlane.xlu0 %1109
    %1111 = vmax.xlane.f32.xlu0 %v1100
    %v1112 = vpop.xlane.xlu0 %1111
    %1113 = vmax.xlane.f32.xlu0 %v1101
    %v1114 = vpop.xlane.xlu0 %1113
    %1115 = vmax.xlane.f32.xlu0 %v1102
    %v1116 = vpop.xlane.xlu0 %1115
    %1117 = vmax.xlane.f32.xlu0 %v1103
    %v1118 = vpop.xlane.xlu0 %1117
    %1119 = vmax.xlane.f32.xlu0 %v1104
    %v1120 = vpop.xlane.xlu0 %1119
    %v1121 = vsub.f32 %v1097, %v1106
    %v1122 = vsub.f32 %v1098, %v1108
    %v1123 = vsub.f32 %v1099, %v1110
    %v1124 = vsub.f32 %v1100, %v1112
    %v1125 = vsub.f32 %v1101, %v1114
    %v1126 = vsub.f32 %v1102, %v1116
    %v1127 = vsub.f32 %v1103, %v1118
    %v1128 = vsub.f32 %v1104, %v1120
    %v1129 = vmul.f32 %v1121, 1.442695
    %v1130 = vpow.pop %v1129
    %v1131 = vmul.f32 %v1122, 1.442695
    %v1132 = vpow.pop %v1131
    %v1133 = vmul.f32 %v1123, 1.442695
    %v1134 = vpow.pop %v1133
    %v1135 = vmul.f32 %v1124, 1.442695
    %v1136 = vpow.pop %v1135
    %v1137 = vmul.f32 %v1125, 1.442695
    %v1138 = vpow.pop %v1137
    %v1139 = vmul.f32 %v1126, 1.442695
    %v1140 = vpow.pop %v1139
    %v1141 = vmul.f32 %v1127, 1.442695
    %v1142 = vpow.pop %v1141
    %v1143 = vmul.f32 %v1128, 1.442695
    %v1144 = vpow.pop %v1143
    %1145 = vadd.xlane.f32.xlu0 %v1130
    %v1146 = vpop.xlane.xlu0 %1145
    %1147 = vadd.xlane.f32.xlu0 %v1132
    %v1148 = vpop.xlane.xlu0 %1147
    %1149 = vadd.xlane.f32.xlu0 %v1134
    %v1150 = vpop.xlane.xlu0 %1149
    %1151 = vadd.xlane.f32.xlu0 %v1136
    %v1152 = vpop.xlane.xlu0 %1151
    %1153 = vadd.xlane.f32.xlu0 %v1138
    %v1154 = vpop.xlane.xlu0 %1153
    %1155 = vadd.xlane.f32.xlu0 %v1140
    %v1156 = vpop.xlane.xlu0 %1155
    %1157 = vadd.xlane.f32.xlu0 %v1142
    %v1158 = vpop.xlane.xlu0 %1157
    %1159 = vadd.xlane.f32.xlu0 %v1144
    %v1160 = vpop.xlane.xlu0 %1159
    %v1161 = vlog2.pop %v1146
    %v1162 = vmul.f32 %v1161, 0.6931472
    %v1163 = vlog2.pop %v1148
    %v1164 = vmul.f32 %v1163, 0.6931472
    %v1165 = vlog2.pop %v1150
    %v1166 = vmul.f32 %v1165, 0.6931472
    %v1167 = vlog2.pop %v1152
    %v1168 = vmul.f32 %v1167, 0.6931472
    %v1169 = vlog2.pop %v1154
    %v1170 = vmul.f32 %v1169, 0.6931472
    %v1171 = vlog2.pop %v1156
    %v1172 = vmul.f32 %v1171, 0.6931472
    %v1173 = vlog2.pop %v1158
    %v1174 = vmul.f32 %v1173, 0.6931472
    %v1175 = vlog2.pop %v1160
    %v1176 = vmul.f32 %v1175, 0.6931472
    %v1177 = vsub.f32 %v1121, %v1162
    %v1178 = vsub.f32 %v1122, %v1164
    %v1179 = vsub.f32 %v1123, %v1166
    %v1180 = vsub.f32 %v1124, %v1168
    %v1181 = vsub.f32 %v1125, %v1170
    %v1182 = vsub.f32 %v1126, %v1172
    %v1183 = vsub.f32 %v1127, %v1174
    %v1184 = vsub.f32 %v1128, %v1176
    %1185 = vst [vmem:[#allocation8] sm:$0xff] %v1177
    %1186 = vst [vmem:[#allocation8 + $0x8] sm:$0xff] %v1178
    %1187 = vst [vmem:[#allocation8 + $0x10] sm:$0xff] %v1179
    %1188 = vst [vmem:[#allocation8 + $0x18] sm:$0xff] %v1180
    %1189 = vst [vmem:[#allocation8 + $0x20] sm:$0xff] %v1181
    %1190 = vst [vmem:[#allocation8 + $0x28] sm:$0xff] %v1182
    %1191 = vst [vmem:[#allocation8 + $0x30] sm:$0xff] %v1183
    %1192 = vst [vmem:[#allocation8 + $0x38] sm:$0xff] %v1184
    // Predicated region
    $region34: #{tpu_custom_call.1} parent=1 // pred_check
      _
    $region35: #{tpu_custom_call.1} parent=1 // pred_check_branch
      %1194 = sbr.rel (0) target = $region37
    $region36: #{tpu_custom_call.1} parent=1 // pred_region
      %s1196 = ssub.s32 1024, 1024
      %1197 = vsyncadd [#allocation4], %s1196
      %s1198 = sshll.u32 [#allocation8], 4
      %s1199 = int_to_ptr.vmem [resolvable:$true] %s1198
      %1204 = dma.vmem_to_hbm [thread:$0]  %s1199, 1024, %s5, [#allocation4], 128, 128, 8
    $region37: #{tpu_custom_call.1} parent=1 // pred_fallthru
      _
    // Predicated region
    $region38: #{tpu_custom_call.1} parent=1 // pred_check
      _
    $region39: #{tpu_custom_call.1} parent=1 // pred_check_branch
      %1206 = sbr.rel (0) target = $region41
    $region40: #{tpu_custom_call.1} parent=1 // pred_region
      %1207 = dma.done [#allocation4], 1024
    $region41: #{tpu_custom_call.1} parent=1 // pred_fallthru
      _
    %1208 = vsyncpa [#allocation3], 1
    %1209 = vsyncpa [#allocation6], 1
    %1210 = vsyncpa [#allocation4], 1

</llo_original>
